<compile_context>
chip_gen: v6e
topology: v6e:2x2x1
jax: 0.10.0
libtpu: 0.0.40
codegen_flags: <defaults>
</compile_context>

<pallas_src>
import functools

import jax
import jax.numpy as jnp
from jax.experimental import pallas as pl
from jax.experimental.pallas import tpu as pltpu


def _round_up(x, m):
    return ((x + m - 1) // m) * m


# ---------------------------------------------------------------------------
# Kernel 1: FFNTaskPlug.get_adapter (enc + dec fused into one call)
#   enc/dec_adapter_A/B are Linear(1, L*D*Bn) (no bias) applied to torch.ones(1,1),
#   i.e. output == weight-column * 1.0.  The multiply keeps the "ones" input in the
#   computation exactly as in the PyTorch forward; the cat([A, B], dim=1) is realized
#   by writing [A_l | B_l] per layer row so the 5-D view needs no transpose.
# ---------------------------------------------------------------------------
def _adapters_kernel(ones_ref, *refs):
    # refs = (wa_0, wb_0, ..., wa_{n-1}, wb_{n-1}, out_0, ..., out_{n-1})
    n = len(refs) // 3
    x = ones_ref[0, 0]                      # scalar "ones" input (SMEM)
    for k in range(n):
        wa = refs[2 * k]
        wb = refs[2 * k + 1]
        o = refs[2 * n + k]
        F = wa.shape[-1]
        o[:, :F] = (wa[...] * x).astype(o.dtype)      # A -> first F lanes
        o[:, F:] = (wb[...] * x).astype(o.dtype)      # B -> last  F lanes
    # Both stores are static lane-dim slices: dense, unmasked when F % 128 == 0.


def get_adapters(weight_pairs, ones_val, *, vmem_budget_bytes=24 << 20):
    """weight_pairs: list of (wa, wb) pairs, each of shape (L, D, Bn), all identical shapes.
    Returns list of (L, 2, 1, D, Bn) arrays == torch cat([A.view(...), B.view(...)], dim=1)."""
    n = len(weight_pairs)
    L, D, Bn = weight_pairs[0][0].shape
    dtype = weight_pairs[0][0].dtype
    F = D * Bn
    flats = []
    for wa, wb in weight_pairs:
        assert wa.shape == (L, D, Bn) and wb.shape == (L, D, Bn)
        flats += [wa.reshape(L, F), wb.reshape(L, F)]

    item = jnp.dtype(dtype).itemsize
    # per layer per step: (F + F) in + 2F out, double-buffered, for each of n pairs
    per_layer = 8 * n * F * item
    tl = max(1, min(L, vmem_budget_bytes // max(per_layer, 1)))
    if tl < L:
        tl = min(L, max(8, (tl // 8) * 8))      # second-minor block dim: mult of 8 or == L
    grid = (pl.cdiv(L, tl),)

    vmem_limit = int(min(max(per_layer * tl + (4 << 20), 8 << 20), 40 << 20))

    w_spec = pl.BlockSpec((tl, F), lambda i: (i, 0))
    o_spec = pl.BlockSpec((tl, 2 * F), lambda i: (i, 0))
    ones_spec = pl.BlockSpec(memory_space=pltpu.MemorySpace.SMEM)   # whole (1,1) scalar

    outs = pl.pallas_call(
        _adapters_kernel,
        out_shape=[jax.ShapeDtypeStruct((L, 2 * F), dtype) for _ in range(n)],
        grid=grid,
        in_specs=[ones_spec] + [w_spec] * (2 * n),
        out_specs=[o_spec] * n,
        compiler_params=pltpu.CompilerParams(
            dimension_semantics=("parallel",),
            vmem_limit_bytes=vmem_limit,
        ),
    )(ones_val, *flats)
    # (L, 2*F) -> (L, 2, 1, D, Bn) is a free view (no transpose, no extra HBM traffic).
    return [o.reshape(L, 2, 1, D, Bn) for o in outs]


# ---------------------------------------------------------------------------
# Kernel 2: MapNet.forward  (doc_plug_mapper)
#   delta = w_out( act( w_in(doc_rep) ) ) ; return delta + doc_rep
#   Linear layers are bias-free (bias=False in the module). Residual fused in,
#   added from the UN-cast input tile (original precision).
# ---------------------------------------------------------------------------
def _mapnet_kernel(x_ref, w1_ref, w2_ref, o_ref, *, compute_dtype):
    x = x_ref[...]                                     # original dtype (residual operand)
    xc = x.astype(compute_dtype)                       # bf16 MXU operand by default
    h = jnp.dot(xc, w1_ref[...], preferred_element_type=jnp.float32)
    # TODO(synk): exact activation of the repo's MLP helper is not shown; assuming
    # tanh-approx GELU (known-good Mosaic lowering). Swap for the repo's activation
    # (exact erf-GELU / ReLU) for bit-parity with the PyTorch module.
    h = jax.nn.gelu(h)
    delta = jnp.dot(h.astype(compute_dtype), w2_ref[...],
                    preferred_element_type=jnp.float32)
    o_ref[...] = (delta + x.astype(jnp.float32)).astype(o_ref.dtype)


def _default_tm():
    try:
        kind = jax.devices()[0].device_kind.lower()
    except Exception:
        return 256
    # v5e and older: 128-wide MXU, 1 vst slot, lower HBM BW -> keep tiles modest.
    if any(v in kind for v in ("v2", "v3", "v4", "v5")):
        return 256
    return 512          # v6e / v7x


def mapnet_forward(doc_rep, mask, w1, w2, *, tm=None, compute_dtype=jnp.bfloat16):
    """doc_rep: (B, S, H); mask is unused (matches PyTorch MapNet.forward).

    compute_dtype: MXU operand dtype (default bf16 -> peak MXU rate on v5e/v6e/v7x and
    halved weight DMA).  Accumulation and the residual add stay in f32; the residual is
    taken from the un-cast input tile; output keeps doc_rep.dtype.  Pass None for
    full-precision compute.
    """
    del mask
    B, S, H = doc_rep.shape
    M = w1.shape[1]
    n_tok = B * S
    x = doc_rep.reshape(n_tok, H)

    if compute_dtype is None:
        compute_dtype = x.dtype
    w1c = w1.astype(compute_dtype)
    w2c = w2.astype(compute_dtype)

    if tm is None:
        tm = _default_tm()

    # Token tile: MXU-aligned (multiple of 128) when tiling, whole array when tiny.
    if n_tok <= tm:
        tm_eff = _round_up(max(n_tok, 1), 8)
    else:
        tm_eff = max(128, (min(tm, n_tok) // 128) * 128)
        g = pl.cdiv(n_tok, tm_eff)
        # Prefer an even grid so v7x's two TensorCores split the parallel token axis evenly.
        if g > 1 and g % 2 == 1 and tm_eff >= 256:
            alt = tm_eff // 2
            if alt % 128 == 0 and pl.cdiv(n_tok, alt) % 2 == 0:
                tm_eff = alt
    grid = (pl.cdiv(n_tok, tm_eff),)

    x_item = jnp.dtype(x.dtype).itemsize
    o_item = jnp.dtype(doc_rep.dtype).itemsize
    w_item = jnp.dtype(compute_dtype).itemsize
    act_bytes = 2 * tm_eff * H * (x_item + o_item)     # double-buffered in/out tiles
    w_bytes = 2 * H * M * w_item                       # single-buffered weights
    tmp_bytes = tm_eff * (M + H) * 4                   # f32 h / delta intermediates
    # Tight budget (no 2x fudge), capped at 40 MiB to leave headroom on v7x's 64 MiB VMEM.
    vmem_limit = int(min(max(act_bytes + w_bytes + tmp_bytes + (4 << 20), 8 << 20), 40 << 20))

    cost = pl.CostEstimate(
        flops=4 * n_tok * H * M,                       # two (n_tok,H)x(H,M)-shaped matmuls
        transcendentals=n_tok * M,                     # gelu
        bytes_accessed=n_tok * H * (x_item + o_item) + 2 * H * M * w_item,
    )

    kernel = functools.partial(_mapnet_kernel, compute_dtype=compute_dtype)
    out = pl.pallas_call(
        kernel,
        out_shape=jax.ShapeDtypeStruct((n_tok, H), doc_rep.dtype),
        grid=grid,
        in_specs=[
            pl.BlockSpec((tm_eff, H), lambda i: (i, 0)),
            # Weights are grid-invariant (index_map == (0,0)): single-buffer them.
            pl.BlockSpec((H, M), lambda i: (0, 0), pipeline_mode=pl.Buffered(1)),
            pl.BlockSpec((M, H), lambda i: (0, 0), pipeline_mode=pl.Buffered(1)),
        ],
        out_specs=pl.BlockSpec((tm_eff, H), lambda i: (i, 0)),
        compiler_params=pltpu.CompilerParams(
            dimension_semantics=("parallel",),         # token axis shards across TCs on v7x
            vmem_limit_bytes=vmem_limit,
        ),
        cost_estimate=cost,
    )(x, w1c, w2c)
    return out.reshape(B, S, H)


# ---------------------------------------------------------------------------
# PlugD forward (glue).  pretrain=False path:
#   adapters from task_plug (Pallas, enc+dec fused), doc_plug = MapNet(encoder(ctx)) (Pallas),
#   then the frozen DeltaT5 call on the question/decoder inputs.
# ---------------------------------------------------------------------------
def plugd_forward(params, data, *, layerth=0, compute_dtype=jnp.bfloat16):
    # FFNTaskPlug.get_adapter — one fused pallas_call when enc/dec shapes match.
    ones_val = jnp.ones((1, 1), jnp.float32)
    if params["enc_A"].shape == params["dec_A"].shape:
        enc_adapters, dec_adapters = get_adapters(
            [(params["enc_A"], params["enc_B"]), (params["dec_A"], params["dec_B"])],
            ones_val,
        )
    else:
        (enc_adapters,) = get_adapters([(params["enc_A"], params["enc_B"])], ones_val)
        (dec_adapters,) = get_adapters([(params["dec_A"], params["dec_B"])], ones_val)

    # TODO(synk): DeltaT5 (pretrained T5 backbone) has no self-contained Pallas
    # equivalent; the encoder last_hidden is stood in by a deterministic embedding lookup.
    last_hidden = params["embed"][data["ctx_input_ids"]]          # (B, S, H)

    # generate_doc_plug: doc_plug_mapper(last_hidden, mask)
    doc_plug = mapnet_forward(
        last_hidden, data["ctx_attention_mask"], params["map_w1"], params["map_w2"],
        compute_dtype=compute_dtype,
    )
    deltas = {
        "type": "prefix",
        "prefix_num": data["ctx_input_ids"].shape[1],
        "layerth": layerth,
    }

    # TODO(synk): final DeltaT5 decoder call (logits) not reproducible without the
    # pretrained backbone; returning the plug parameters / adapters instead.
    return doc_plug, enc_adapters, dec_adapters, deltas


# ---------------------------------------------------------------------------
if __name__ == "__main__":
    # Small config consistent with the module's __init__.
    batch, ctx_seq = 2, 8
    hidden = 32               # plm_config.dim_model
    mid = int(hidden * 2)     # MapNet mid_ratio=2
    n_enc_layers = 2
    n_dec_layers = 2
    bottleneck = 8
    vocab = 50

    key = jax.random.PRNGKey(0)
    k = jax.random.split(key, 8)

    params = {
        # FFNTaskPlug Linear(1, L*D*Bn) weights (init_std=0.01), stored as (L, D, Bn)
        "enc_A": 0.01 * jax.random.normal(k[0], (n_enc_layers, hidden, bottleneck), jnp.float32),
        "enc_B": 0.01 * jax.random.normal(k[1], (n_enc_layers, hidden, bottleneck), jnp.float32),
        "dec_A": 0.01 * jax.random.normal(k[2], (n_dec_layers, hidden, bottleneck), jnp.float32),
        "dec_B": 0.01 * jax.random.normal(k[3], (n_dec_layers, hidden, bottleneck), jnp.float32),
        # MapNet MLP (init_std=0.02, bias=False): w_in (H, M), w_out (M, H)
        "map_w1": 0.02 * jax.random.normal(k[4], (hidden, mid), jnp.float32),
        "map_w2": 0.02 * jax.random.normal(k[5], (mid, hidden), jnp.float32),
        # placeholder encoder embedding (stand-in for the frozen T5 encoder output)
        "embed": jax.random.normal(k[6], (vocab, hidden), jnp.float32),
    }

    data = {
        "ctx_input_ids": jax.random.randint(k[7], (batch, ctx_seq), 0, vocab, jnp.int32),
        "ctx_attention_mask": jnp.ones((batch, ctx_seq), jnp.float32),
    }

    doc_plug, enc_adapters, dec_adapters, deltas = jax.block_until_ready(
        plugd_forward(params, data)
    )

    # Shape checks (match the PyTorch module).
    assert doc_plug.shape == (batch, ctx_seq, hidden)
    assert enc_adapters.shape == (n_enc_layers, 2, 1, hidden, bottleneck)
    assert dec_adapters.shape == (n_dec_layers, 2, 1, hidden, bottleneck)

    # --- Numerical reference checks (plain JAX) ---
    last_hidden = params["embed"][data["ctx_input_ids"]]

    # bf16-compute path (default): reference mirrors the kernel's bf16 operands + f32 accum,
    # residual added in f32 from the un-cast input.
    xb = last_hidden.astype(jnp.bfloat16)
    w1b = params["map_w1"].astype(jnp.bfloat16)
    w2b = params["map_w2"].astype(jnp.bfloat16)
    h_ref = jax.nn.gelu(jnp.dot(xb, w1b, preferred_element_type=jnp.float32))
    ref_plug_bf16 = last_hidden + jnp.dot(h_ref.astype(jnp.bfloat16), w2b,
                                          preferred_element_type=jnp.float32)
    assert jnp.allclose(doc_plug, ref_plug_bf16, atol=2e-2, rtol=2e-2)

    # full-precision path: tight tolerance against the pure f32 reference.
    doc_plug_f32 = jax.block_until_ready(
        mapnet_forward(last_hidden, data["ctx_attention_mask"],
                       params["map_w1"], params["map_w2"], compute_dtype=None)
    )
    ref_plug_f32 = last_hidden + jax.nn.gelu(last_hidden @ params["map_w1"]) @ params["map_w2"]
    assert jnp.allclose(doc_plug_f32, ref_plug_f32, atol=1e-5, rtol=1e-5)

    # adapter outputs are pure copies of the weight columns (exact).
    ref_enc = jnp.concatenate(
        [params["enc_A"][:, None, None], params["enc_B"][:, None, None]], axis=1
    )
    ref_dec = jnp.concatenate(
        [params["dec_A"][:, None, None], params["dec_B"][:, None, None]], axis=1
    )
    assert jnp.allclose(enc_adapters, ref_enc, atol=1e-6)
    assert jnp.allclose(dec_adapters, ref_dec, atol=1e-6)

    print("KERNEL_OK")
</pallas_src>

<mosaic_0001>
module attributes {stable_mosaic.version = 11 : i64} {
  func.func @_adapters_kernel(%arg0: i32, %arg1: memref<1x1xf32, #tpu.memory_space<smem>>, %arg2: memref<2x256xf32, #tpu.memory_space<vmem>>, %arg3: memref<2x256xf32, #tpu.memory_space<vmem>>, %arg4: memref<2x256xf32, #tpu.memory_space<vmem>>, %arg5: memref<2x256xf32, #tpu.memory_space<vmem>>, %arg6: memref<2x512xf32, #tpu.memory_space<vmem>>, %arg7: memref<2x512xf32, #tpu.memory_space<vmem>>) attributes {dimension_semantics = [#tpu.dimension_semantics<parallel>], iteration_bounds = array<i64: 1>, scalar_prefetch = 0 : i64, scratch_operands = 0 : i64, tpu.core_type = #tpu.core_type<tc>, window_params = [{transform_indices = @transform_0, window_bounds = array<i64: 1, 1>}, {transform_indices = @transform_1, window_bounds = array<i64: 2, 256>}, {transform_indices = @transform_2, window_bounds = array<i64: 2, 256>}, {transform_indices = @transform_3, window_bounds = array<i64: 2, 256>}, {transform_indices = @transform_4, window_bounds = array<i64: 2, 256>}, {transform_indices = @transform_5, window_bounds = array<i64: 2, 512>}, {transform_indices = @transform_6, window_bounds = array<i64: 2, 512>}]} {
    %c0 = arith.constant 0 : index
    %c0_0 = arith.constant 0 : index
    %0 = memref.load %arg1[%c0, %c0_0] : memref<1x1xf32, #tpu.memory_space<smem>>
    %c0_1 = arith.constant 0 : index
    %c0_2 = arith.constant 0 : index
    %1 = vector.load %arg2[%c0_1, %c0_2] : memref<2x256xf32, #tpu.memory_space<vmem>>, vector<2x256xf32>
    %2 = vector.broadcast %0 : f32 to vector<2x256xf32>
    %3 = arith.mulf %1, %2 : vector<2x256xf32>
    %c0_3 = arith.constant 0 : index
    %c0_4 = arith.constant 0 : index
    %4 = vector.load %arg6[%c0_3, %c0_4] : memref<2x512xf32, #tpu.memory_space<vmem>>, vector<2x256xf32>
    tpu.vector_store %arg6[%c0_3, %c0_4], %3 {strides = array<i32>} : memref<2x512xf32, #tpu.memory_space<vmem>>, vector<2x256xf32>,
    %c0_5 = arith.constant 0 : index
    %c0_6 = arith.constant 0 : index
    %5 = vector.load %arg3[%c0_5, %c0_6] : memref<2x256xf32, #tpu.memory_space<vmem>>, vector<2x256xf32>
    %6 = vector.broadcast %0 : f32 to vector<2x256xf32>
    %7 = arith.mulf %5, %6 : vector<2x256xf32>
    %c0_7 = arith.constant 0 : index
    %c256 = arith.constant 256 : index
    %8 = vector.load %arg6[%c0_7, %c256] : memref<2x512xf32, #tpu.memory_space<vmem>>, vector<2x256xf32>
    tpu.vector_store %arg6[%c0_7, %c256], %7 {strides = array<i32>} : memref<2x512xf32, #tpu.memory_space<vmem>>, vector<2x256xf32>,
    %c0_8 = arith.constant 0 : index
    %c0_9 = arith.constant 0 : index
    %9 = vector.load %arg4[%c0_8, %c0_9] : memref<2x256xf32, #tpu.memory_space<vmem>>, vector<2x256xf32>
    %10 = vector.broadcast %0 : f32 to vector<2x256xf32>
    %11 = arith.mulf %9, %10 : vector<2x256xf32>
    %c0_10 = arith.constant 0 : index
    %c0_11 = arith.constant 0 : index
    %12 = vector.load %arg7[%c0_10, %c0_11] : memref<2x512xf32, #tpu.memory_space<vmem>>, vector<2x256xf32>
    tpu.vector_store %arg7[%c0_10, %c0_11], %11 {strides = array<i32>} : memref<2x512xf32, #tpu.memory_space<vmem>>, vector<2x256xf32>,
    %c0_12 = arith.constant 0 : index
    %c0_13 = arith.constant 0 : index
    %13 = vector.load %arg5[%c0_12, %c0_13] : memref<2x256xf32, #tpu.memory_space<vmem>>, vector<2x256xf32>
    %14 = vector.broadcast %0 : f32 to vector<2x256xf32>
    %15 = arith.mulf %13, %14 : vector<2x256xf32>
    %c0_14 = arith.constant 0 : index
    %c256_15 = arith.constant 256 : index
    %16 = vector.load %arg7[%c0_14, %c256_15] : memref<2x512xf32, #tpu.memory_space<vmem>>, vector<2x256xf32>
    tpu.vector_store %arg7[%c0_14, %c256_15], %15 {strides = array<i32>} : memref<2x512xf32, #tpu.memory_space<vmem>>, vector<2x256xf32>,
    return
  }
  func.func @transform_0(%arg0: i32) -> (i32, i32) {
    %c0_i32 = arith.constant 0 : i32
    %c0_i32_0 = arith.constant 0 : i32
    %c0_i32_1 = arith.constant 0 : i32
    return %c0_i32, %c0_i32_0 : i32, i32
  }
  func.func @transform_1(%arg0: i32) -> (i32, i32) {
    %c0_i32 = arith.constant 0 : i32
    %c0_i32_0 = arith.constant 0 : i32
    return %arg0, %c0_i32 : i32, i32
  }
  func.func @transform_2(%arg0: i32) -> (i32, i32) {
    %c0_i32 = arith.constant 0 : i32
    %c0_i32_0 = arith.constant 0 : i32
    return %arg0, %c0_i32 : i32, i32
  }
  func.func @transform_3(%arg0: i32) -> (i32, i32) {
    %c0_i32 = arith.constant 0 : i32
    %c0_i32_0 = arith.constant 0 : i32
    return %arg0, %c0_i32 : i32, i32
  }
  func.func @transform_4(%arg0: i32) -> (i32, i32) {
    %c0_i32 = arith.constant 0 : i32
    %c0_i32_0 = arith.constant 0 : i32
    return %arg0, %c0_i32 : i32, i32
  }
  func.func @transform_5(%arg0: i32) -> (i32, i32) {
    %c0_i32 = arith.constant 0 : i32
    %c0_i32_0 = arith.constant 0 : i32
    return %arg0, %c0_i32 : i32, i32
  }
  func.func @transform_6(%arg0: i32) -> (i32, i32) {
    %c0_i32 = arith.constant 0 : i32
    %c0_i32_0 = arith.constant 0 : i32
    return %arg0, %c0_i32 : i32, i32
  }
}

</mosaic_0001>

<llo_original>
// kernel: tpu_custom_call.1
$region0: #{tpu_custom_call.1}
  #allocation0 [shape = 'u32[]', space=smem, size = 0x4, offset = 0x4, fixed_abs, tag = 'smem constant byte address 0x4 - core index']
  #allocation1 [shape = 'u32[144,128]{1,0:T(1,128)}', space=vmem, size = 0x12000, scoped, tag = 'internal scratch']
  #allocation2 [shape = 'f32[1,1]{1,0:T(1,128)S(6)}', space=smem, size = 0x200, scoped, tag = 'scoped memory for tpu_custom_call.1']
  %s0 = inlined_call_operand.<no memory space> [shape: f32[1,1], index: 0, kind: input, shape index: {}]
  %s1 = inlined_call_operand.hbm [shape: f32[2,256], index: 1, kind: input, shape index: {}]
  %s2 = inlined_call_operand.hbm [shape: f32[2,256], index: 2, kind: input, shape index: {}]
  %s3 = inlined_call_operand.vmem [shape: f32[2,256], index: 3, kind: input, shape index: {}]
  %s4 = inlined_call_operand.hbm [shape: f32[2,256], index: 4, kind: input, shape index: {}]
  %s5 = inlined_call_operand.hbm [shape: f32[2,512], index: 5, kind: output, shape index: {0}]
  %s6 = inlined_call_operand.hbm [shape: f32[2,512], index: 6, kind: output, shape index: {1}]
  %7 = xla_tuple %s5, %s6
  %s8 = sld [smem:[#allocation0]]
  $region50: #{tpu_custom_call.1} parent=0
    _
  %s10 = ssub.s32 1, %s8
  %s11 = scalar_select 0, %s10, %s8
  %12 = sst [smem:[#allocation2]] %s0
  $region1: #{tpu_custom_call.1} parent=0
    #allocation3 [shape = 'u8[2048]{0}', space=vmem, size = 0x800, scoped, tag = 'input window, operand 1, single buffered']
    #allocation4 [shape = 's32[1]{0}', space=sflag, size = 0x4, scoped, tag = 'scoped memory for tpu_custom_call.1']
    #allocation5 [shape = 's32[1]{0}', space=sflag, size = 0x4, scoped, tag = 'scoped memory for tpu_custom_call.1']
    #allocation6 [shape = 'u8[2048]{0}', space=vmem, size = 0x800, scoped, tag = 'input window, operand 2, single buffered']
    #allocation7 [shape = 's32[1]{0}', space=sflag, size = 0x4, scoped, tag = 'scoped memory for tpu_custom_call.1']
    #allocation8 [shape = 'u8[2048]{0}', space=vmem, size = 0x800, scoped, tag = 'input window, operand 4, single buffered']
    #allocation9 [shape = 'u8[4096]{0}', space=vmem, size = 0x1000, scoped, tag = 'output window, operand 0, single buffered']
    #allocation10 [shape = 'u8[4096]{0}', space=vmem, size = 0x1000, scoped, tag = 'output window, operand 1, single buffered']
    #allocation11 [shape = 's32[1]{0}', space=sflag, size = 0x4, scoped, tag = 'scoped memory for tpu_custom_call.1']
    %13 = vsyncpa [#allocation4], 0
    %14 = vsyncpa [#allocation7], 0
    %15 = vsyncpa [#allocation5], 0
    %16 = vsyncpa [#allocation11], 0
    // Predicated region
    $region2: #{tpu_custom_call.1} parent=1 // pred_check
      _
    $region3: #{tpu_custom_call.1} parent=1 // pred_check_branch
      %18 = sbr.rel (0) target = $region5
    $region4: #{tpu_custom_call.1} parent=1 // pred_region
      _
    $region5: #{tpu_custom_call.1} parent=1 // pred_fallthru
      _
    // Predicated region
    $region6: #{tpu_custom_call.1} parent=1 // pred_check
      _
    $region7: #{tpu_custom_call.1} parent=1 // pred_check_branch
      %20 = sbr.rel (0) target = $region9
    $region8: #{tpu_custom_call.1} parent=1 // pred_region
      %s22 = ssub.s32 64, 64
      %23 = vsyncadd [#allocation4], %s22
      %s25 = sshll.u32 [#allocation3], 4
      %s26 = int_to_ptr.vmem [resolvable:$true] %s25
      %28 = dma.hbm_to_vmem [thread:$0]  %s1, 64, %s26, [#allocation4]
    $region9: #{tpu_custom_call.1} parent=1 // pred_fallthru
      _
    // Predicated region
    $region10: #{tpu_custom_call.1} parent=1 // pred_check
      _
    $region11: #{tpu_custom_call.1} parent=1 // pred_check_branch
      %30 = sbr.rel (0) target = $region13
    $region12: #{tpu_custom_call.1} parent=1 // pred_region
      %s32 = ssub.s32 64, 64
      %33 = vsyncadd [#allocation7], %s32
      %s35 = sshll.u32 [#allocation6], 4
      %s36 = int_to_ptr.vmem [resolvable:$true] %s35
      %38 = dma.hbm_to_vmem [thread:$0]  %s2, 64, %s36, [#allocation7]
    $region13: #{tpu_custom_call.1} parent=1 // pred_fallthru
      _
    // Predicated region
    $region14: #{tpu_custom_call.1} parent=1 // pred_check
      _
    $region15: #{tpu_custom_call.1} parent=1 // pred_check_branch
      %40 = sbr.rel (0) target = $region17
    $region16: #{tpu_custom_call.1} parent=1 // pred_region
      _
    $region17: #{tpu_custom_call.1} parent=1 // pred_fallthru
      _
    // Predicated region
    $region18: #{tpu_custom_call.1} parent=1 // pred_check
      _
    $region19: #{tpu_custom_call.1} parent=1 // pred_check_branch
      %42 = sbr.rel (0) target = $region21
    $region20: #{tpu_custom_call.1} parent=1 // pred_region
      %s44 = ssub.s32 64, 64
      %45 = vsyncadd [#allocation7], %s44
      %s47 = sshll.u32 [#allocation8], 4
      %s48 = int_to_ptr.vmem [resolvable:$true] %s47
      %50 = dma.hbm_to_vmem [thread:$0]  %s4, 64, %s48, [#allocation7]
    $region21: #{tpu_custom_call.1} parent=1 // pred_fallthru
      _
    // Predicated region
    $region22: #{tpu_custom_call.1} parent=1 // pred_check
      _
    $region23: #{tpu_custom_call.1} parent=1 // pred_check_branch
      %52 = sbr.rel (0) target = $region25
    $region24: #{tpu_custom_call.1} parent=1 // pred_region
      %53 = dma.done [#allocation4], 64
    $region25: #{tpu_custom_call.1} parent=1 // pred_fallthru
      _
    // Predicated region
    $region26: #{tpu_custom_call.1} parent=1 // pred_check
      _
    $region27: #{tpu_custom_call.1} parent=1 // pred_check_branch
      %55 = sbr.rel (0) target = $region29
    $region28: #{tpu_custom_call.1} parent=1 // pred_region
      %56 = dma.done [#allocation7], 64
    $region29: #{tpu_custom_call.1} parent=1 // pred_fallthru
      _
    // Predicated region
    $region30: #{tpu_custom_call.1} parent=1 // pred_check
      _
    $region31: #{tpu_custom_call.1} parent=1 // pred_check_branch
      %58 = sbr.rel (0) target = $region33
    $region32: #{tpu_custom_call.1} parent=1 // pred_region
      %59 = dma.done [#allocation7], 64
    $region33: #{tpu_custom_call.1} parent=1 // pred_fallthru
      _
    %s60 = sld [smem:[#allocation2]]
    %v61 = vld [vmem:[#allocation3] sm:$0xf]
    %v62 = vstv %s60
    %v63 = vmul.f32 %v61, %v62
    %64 = vst [vmem:[#allocation9] sm:$0xf] %v63
    %v65 = vld [vmem:[#allocation6] sm:$0xf]
    %v66 = vmul.f32 %v65, %v62
    %67 = vst [vmem:[#allocation9 + $0x4] sm:$0xf] %v66
    %v68 = vld [vmem:[%s3] sm:$0xf]
    %v69 = vmul.f32 %v68, %v62
    %70 = vst [vmem:[#allocation10] sm:$0xf] %v69
    %v71 = vld [vmem:[#allocation8] sm:$0xf]
    %v72 = vmul.f32 %v71, %v62
    %73 = vst [vmem:[#allocation10 + $0x4] sm:$0xf] %v72
    // Predicated region
    $region34: #{tpu_custom_call.1} parent=1 // pred_check
      _
    $region35: #{tpu_custom_call.1} parent=1 // pred_check_branch
      %75 = sbr.rel (0) target = $region37
    $region36: #{tpu_custom_call.1} parent=1 // pred_region
      %s77 = ssub.s32 128, 128
      %78 = vsyncadd [#allocation5], %s77
      %s80 = sshll.u32 [#allocation9], 4
      %s81 = int_to_ptr.vmem [resolvable:$true] %s80
      %83 = dma.vmem_to_hbm [thread:$0]  %s81, 128, %s5, [#allocation5]
    $region37: #{tpu_custom_call.1} parent=1 // pred_fallthru
      _
    // Predicated region
    $region38: #{tpu_custom_call.1} parent=1 // pred_check
      _
    $region39: #{tpu_custom_call.1} parent=1 // pred_check_branch
      %85 = sbr.rel (0) target = $region41
    $region40: #{tpu_custom_call.1} parent=1 // pred_region
      %s87 = ssub.s32 128, 128
      %88 = vsyncadd [#allocation11], %s87
      %s90 = sshll.u32 [#allocation10], 4
      %s91 = int_to_ptr.vmem [resolvable:$true] %s90
      %93 = dma.vmem_to_hbm [thread:$0]  %s91, 128, %s6, [#allocation11]
    $region41: #{tpu_custom_call.1} parent=1 // pred_fallthru
      _
    // Predicated region
    $region42: #{tpu_custom_call.1} parent=1 // pred_check
      _
    $region43: #{tpu_custom_call.1} parent=1 // pred_check_branch
      %95 = sbr.rel (0) target = $region45
    $region44: #{tpu_custom_call.1} parent=1 // pred_region
      %96 = dma.done [#allocation5], 128
    $region45: #{tpu_custom_call.1} parent=1 // pred_fallthru
      _
    // Predicated region
    $region46: #{tpu_custom_call.1} parent=1 // pred_check
      _
    $region47: #{tpu_custom_call.1} parent=1 // pred_check_branch
      %98 = sbr.rel (0) target = $region49
    $region48: #{tpu_custom_call.1} parent=1 // pred_region
      %99 = dma.done [#allocation11], 128
    $region49: #{tpu_custom_call.1} parent=1 // pred_fallthru
      _
    %100 = vsyncpa [#allocation4], 1
    %101 = vsyncpa [#allocation7], 1
    %102 = vsyncpa [#allocation5], 1
    %103 = vsyncpa [#allocation11], 1

</llo_original>
